<compile_context>
chip_gen: v5e
topology: v5e:2x2
jax: 0.10.0
libtpu: 0.0.40
codegen_flags: <defaults>
</compile_context>

<pallas_src>
import functools

import jax
import jax.numpy as jnp
from jax.experimental import pallas as pl
from jax.experimental.pallas import tpu as pltpu


def _decoder_block_kernel(xa_ref, xb_ref, w4_ref, bmid_ref, w2_ref, b2_ref,
                          o_ref, slab_ref, *, tm, offsets):
    """One grid step = tm 'virtual pixels' of the padded NHWC grid.

    xa_ref  : (tm, Cin)         main slab of the flattened padded input
    xb_ref  : (blk2, Cin)       halo = first rows of the next slab
    w4_ref  : (4, Cin, 4*Cmid)  phase-grouped deconv taps (BatchNorm folded)
    bmid_ref: (1, 4*Cmid)       folded deconv+BN bias (f32)
    w2_ref  : (4*Cmid, 4*Cout)  block-diagonal 1x1-conv weight
    b2_ref  : (1, 4*Cout)       1x1-conv bias (f32)
    o_ref   : (tm, 4*Cout)      per-pixel phase-packed output
    slab_ref: (tm+blk2, Cin)    VMEM scratch holding main slab + halo
    """
    blk2 = xb_ref.shape[0]
    slab_ref[0:tm, :] = xa_ref[...]
    slab_ref[tm:tm + blk2, :] = xb_ref[...]

    # Stride-2 transposed conv as 4 output phases: tap t of pixel r lives at
    # flat row r + offsets[t] of the padded grid.  One dot per tap, f32 acc.
    acc = jnp.dot(slab_ref[pl.ds(offsets[0], tm), :], w4_ref[0],
                  preferred_element_type=jnp.float32)
    for t in range(1, 4):
        acc = acc + jnp.dot(slab_ref[pl.ds(offsets[t], tm), :], w4_ref[t],
                            preferred_element_type=jnp.float32)
    h = jnp.maximum(acc + bmid_ref[...], 0.0)          # folded BN + bias + ReLU

    # 1x1 conv applied per phase via a block-diagonal weight.
    out = jnp.dot(h.astype(w2_ref.dtype), w2_ref[...],
                  preferred_element_type=jnp.float32)
    o_ref[...] = (out + b2_ref[...]).astype(o_ref.dtype)


def decoder_block_forward(x, w_deconv, b_deconv, bn_gamma, bn_beta, bn_mean,
                          bn_var, w_out, b_out, *, eps=1e-5, tile_rows=1024):
    """DecoderBlock forward (eval-mode BatchNorm), NCHW in / NCHW out.

    x        : (B, Cin, H, W)
    w_deconv : (Cin, Cmid, 3, 3)   ConvTranspose2d weight (k=3, s=2, p=1, op=1)
    b_deconv : (Cmid,)
    bn_*     : (Cmid,)             BatchNorm2d weight/bias/running stats
    w_out    : (Cout, Cmid, 1, 1)  1x1 Conv2d weight
    b_out    : (Cout,)
    returns  : (B, Cout, 2H, 2W)
    """
    B, Cin, H, W = x.shape
    Cmid = w_deconv.shape[1]
    Cout = w_out.shape[0]
    dtype = x.dtype
    Wp = W + 1                                  # padded row width (virtual grid)

    # ---- trace-time parameter prep (everything scalar-ish hoisted) ----------
    # TODO(synk): training-mode BatchNorm (batch statistics) is not implemented;
    # eval-mode running stats are folded into the deconv weights/bias.
    bn_scale = (bn_gamma / jnp.sqrt(bn_var + eps)).astype(jnp.float32)   # (Cmid,)
    bn_shift = (bn_beta - bn_scale * bn_mean).astype(jnp.float32)        # (Cmid,)

    w = w_deconv.astype(jnp.float32)            # taps w[:, :, ky, kx] : (Cin, Cmid)
    zero = jnp.zeros((Cin, Cmid), jnp.float32)
    # Output phase p = 2*dy + dx at out[2i+dy, 2j+dx]; taps grouped per input shift:
    #   shift (0,0): p0 w[1,1] | p1 w[1,2] | p2 w[2,1] | p3 w[2,2]
    #   shift (0,1): p1 w[1,0] | p3 w[2,0]
    #   shift (1,0): p2 w[0,1] | p3 w[0,2]
    #   shift (1,1): p3 w[0,0]
    wa = jnp.concatenate([w[:, :, 1, 1], w[:, :, 1, 2], w[:, :, 2, 1], w[:, :, 2, 2]], axis=1)
    wb = jnp.concatenate([zero,          w[:, :, 1, 0], zero,          w[:, :, 2, 0]], axis=1)
    wc = jnp.concatenate([zero,          zero,          w[:, :, 0, 1], w[:, :, 0, 2]], axis=1)
    wd = jnp.concatenate([zero,          zero,          zero,          w[:, :, 0, 0]], axis=1)
    scale4 = jnp.tile(bn_scale, 4)[None, :]                              # (1, 4*Cmid)
    w4 = jnp.stack([wa * scale4, wb * scale4, wc * scale4, wd * scale4],
                   axis=0).astype(dtype)                                 # (4, Cin, 4*Cmid)
    bias_mid = jnp.tile(b_deconv.astype(jnp.float32) * bn_scale + bn_shift,
                        4)[None, :]                                      # (1, 4*Cmid) f32

    w2t = jnp.transpose(w_out.reshape(Cout, Cmid), (1, 0)).astype(jnp.float32)
    # TODO(synk): for large Cmid/Cout, replace blockdiag(W2 x4) (75% zero FLOPs)
    # with four per-phase (tm, Cmid) @ (Cmid, Cout) dots writing contiguous lanes.
    w2_big = jnp.kron(jnp.eye(4, dtype=jnp.float32), w2t).astype(dtype)  # (4*Cmid, 4*Cout)
    b2_big = jnp.tile(b_out.astype(jnp.float32), 4)[None, :]             # (1, 4*Cout) f32

    # ---- single flattened, zero-padded input (no shifted HBM copies) --------
    x_nhwc = jnp.transpose(x, (0, 2, 3, 1))                    # (B, H, W, Cin)
    xp = jnp.pad(x_nhwc, ((0, 0), (0, 1), (0, 1), (0, 0)))     # halo bottom/right
    Np = B * (H + 1) * Wp                                      # virtual pixels

    # Tile/grid selection: biggest tile that keeps an even, reasonably deep grid,
    # aligned so the halo block (blk2) divides the main block (tm).
    blk2 = max(8, pl.next_power_of_2(W + 2))                   # halo rows >= W+2
    align = max(128, blk2)
    tm = min(int(tile_rows), max(pl.cdiv(Np, 16), align))
    tm = pl.cdiv(tm, align) * align
    k = tm // blk2                                             # halo block stride
    nsteps = pl.cdiv(Np, tm)
    if nsteps % 2:
        nsteps += 1                                            # even grid for v7x megacore
    n_pad = nsteps * tm

    xf = xp.reshape(Np, Cin)
    xf = jnp.pad(xf, ((0, n_pad + blk2 - Np), (0, 0)))         # zero rows for last halo

    itemsize = jnp.dtype(dtype).itemsize
    flops = int(n_pad) * (4 * 2 * Cin * 4 * Cmid + 2 * 4 * Cmid * 4 * Cout)
    bytes_accessed = (itemsize * (n_pad * Cin + nsteps * blk2 * Cin
                                  + n_pad * 4 * Cout
                                  + 4 * Cin * 4 * Cmid + 4 * Cmid * 4 * Cout)
                      + 4 * (4 * Cmid + 4 * Cout))
    cost = pl.CostEstimate(flops=int(flops), transcendentals=0,
                           bytes_accessed=int(bytes_accessed))

    # Explicit VMEM budget (double-buffered ins/outs + scratch + resident
    # weights) so the same tiling also fits v7x's 64 MiB parts.
    per_step = (itemsize * (2 * (tm * Cin + blk2 * Cin + tm * 4 * Cout)
                            + (tm + blk2) * Cin
                            + 4 * Cin * 4 * Cmid + 4 * Cmid * 4 * Cout)
                + 4 * 2 * (4 * Cmid + 4 * Cout))
    vmem_limit = int(min(64 * 1024 * 1024, max(16 * 1024 * 1024, 4 * per_step)))

    kernel = functools.partial(_decoder_block_kernel, tm=tm,
                               offsets=(0, 1, Wp, Wp + 1))

    out_flat = pl.pallas_call(
        kernel,
        out_shape=jax.ShapeDtypeStruct((n_pad, 4 * Cout), dtype),
        grid_spec=pltpu.PrefetchScalarGridSpec(
            num_scalar_prefetch=0,
            grid=(nsteps,),
            in_specs=[
                pl.BlockSpec((tm, Cin), lambda i: (i, 0)),               # main slab
                pl.BlockSpec((blk2, Cin), lambda i: ((i + 1) * k, 0)),   # halo (next slab prefix)
                pl.BlockSpec((4, Cin, 4 * Cmid), lambda i: (0, 0, 0)),   # w4 (resident)
                pl.BlockSpec((1, 4 * Cmid), lambda i: (0, 0)),           # bias_mid
                pl.BlockSpec((4 * Cmid, 4 * Cout), lambda i: (0, 0)),    # w2 block-diag
                pl.BlockSpec((1, 4 * Cout), lambda i: (0, 0)),           # b2
            ],
            out_specs=pl.BlockSpec((tm, 4 * Cout), lambda i: (i, 0)),
            scratch_shapes=[pltpu.VMEM((tm + blk2, Cin), dtype)],
        ),
        compiler_params=pltpu.CompilerParams(
            dimension_semantics=("parallel",),
            vmem_limit_bytes=vmem_limit,
        ),
        cost_estimate=cost,
    )(xf, xf, w4, bias_mid, w2_big, b2_big)

    # ---- phase de-interleave back to NCHW (trace-time layout plumbing; this
    # ---- final transpose can be skipped if the consumer accepts NHWC) -------
    out = out_flat[:Np].reshape(B, H + 1, Wp, 2, 2, Cout)[:, :H, :W]
    out = out.transpose(0, 1, 3, 2, 4, 5).reshape(B, 2 * H, 2 * W, Cout)
    return out.transpose(0, 3, 1, 2)


def _reference(x, w_deconv, b_deconv, bn_gamma, bn_beta, bn_mean, bn_var,
               w_out, b_out, eps=1e-5):
    """Pure-JAX reference matching the PyTorch DecoderBlock (eval-mode BN)."""
    Cout, Cmid = w_out.shape[0], w_out.shape[1]
    # ConvTranspose2d(k=3, s=2, p=1, output_padding=1) == conv with flipped
    # kernel, lhs_dilation=2, padding (low=1, high=2).
    rhs = jnp.transpose(w_deconv[:, :, ::-1, ::-1], (1, 0, 2, 3))  # (Cmid, Cin, 3, 3)
    y = jax.lax.conv_general_dilated(
        x, rhs, window_strides=(1, 1), padding=((1, 2), (1, 2)),
        lhs_dilation=(2, 2), dimension_numbers=("NCHW", "OIHW", "NCHW"))
    y = y + b_deconv[None, :, None, None]
    y = (y - bn_mean[None, :, None, None]) * (
        bn_gamma[None, :, None, None] / jnp.sqrt(bn_var[None, :, None, None] + eps)
    ) + bn_beta[None, :, None, None]
    y = jnp.maximum(y, 0.0)
    out = jnp.einsum("bchw,oc->bohw", y, w_out.reshape(Cout, Cmid))
    return out + b_out[None, :, None, None]


if __name__ == "__main__":
    # DecoderBlock(in_channels=16, out_channels=8) on a small input.
    B, Cin, H, W = 2, 16, 16, 16
    Cout = 8
    Cmid = Cin // 4

    key = jax.random.PRNGKey(0)
    ks = jax.random.split(key, 9)
    x = jax.random.normal(ks[0], (B, Cin, H, W), dtype=jnp.float32)
    w_deconv = jax.random.normal(ks[1], (Cin, Cmid, 3, 3), dtype=jnp.float32) * 0.2
    b_deconv = jax.random.normal(ks[2], (Cmid,), dtype=jnp.float32) * 0.1
    bn_gamma = 1.0 + 0.1 * jax.random.normal(ks[3], (Cmid,), dtype=jnp.float32)
    bn_beta = 0.1 * jax.random.normal(ks[4], (Cmid,), dtype=jnp.float32)
    bn_mean = 0.1 * jax.random.normal(ks[5], (Cmid,), dtype=jnp.float32)
    bn_var = 0.5 + jax.random.uniform(ks[6], (Cmid,), dtype=jnp.float32)
    w_out = jax.random.normal(ks[7], (Cout, Cmid, 1, 1), dtype=jnp.float32) * 0.3
    b_out = jax.random.normal(ks[8], (Cout,), dtype=jnp.float32) * 0.1

    out = decoder_block_forward(x, w_deconv, b_deconv, bn_gamma, bn_beta,
                                bn_mean, bn_var, w_out, b_out)
    jax.block_until_ready(out)

    ref = _reference(x, w_deconv, b_deconv, bn_gamma, bn_beta, bn_mean, bn_var,
                     w_out, b_out)
    assert out.shape == (B, Cout, 2 * H, 2 * W), out.shape
    assert jnp.allclose(out, ref, atol=1e-4, rtol=1e-4), float(
        jnp.max(jnp.abs(out - ref)))

    print("KERNEL_OK")
</pallas_src>

<mosaic_0001>
module attributes {stable_mosaic.version = 11 : i64} {
  func.func @_decoder_block_kernel(%arg0: i32, %arg1: memref<128x16xf32, #tpu.memory_space<vmem>>, %arg2: memref<32x16xf32, #tpu.memory_space<vmem>>, %arg3: memref<4x16x16xf32, #tpu.memory_space<vmem>>, %arg4: memref<1x16xf32, #tpu.memory_space<vmem>>, %arg5: memref<16x32xf32, #tpu.memory_space<vmem>>, %arg6: memref<1x32xf32, #tpu.memory_space<vmem>>, %arg7: memref<128x32xf32, #tpu.memory_space<vmem>>, %arg8: memref<160x16xf32, #tpu.memory_space<vmem>>) attributes {dimension_semantics = [#tpu.dimension_semantics<parallel>], iteration_bounds = array<i64: 6>, scalar_prefetch = 0 : i64, scratch_operands = 1 : i64, tpu.core_type = #tpu.core_type<tc>, window_params = [{transform_indices = @transform_0, window_bounds = array<i64: 128, 16>}, {transform_indices = @transform_1, window_bounds = array<i64: 32, 16>}, {pipeline_mode = #tpu.pipeline_mode<synchronous>, transform_indices = @transform_2, window_bounds = array<i64: 4, 16, 16>}, {pipeline_mode = #tpu.pipeline_mode<synchronous>, transform_indices = @transform_3, window_bounds = array<i64: 1, 16>}, {pipeline_mode = #tpu.pipeline_mode<synchronous>, transform_indices = @transform_4, window_bounds = array<i64: 16, 32>}, {pipeline_mode = #tpu.pipeline_mode<synchronous>, transform_indices = @transform_5, window_bounds = array<i64: 1, 32>}, {transform_indices = @transform_6, window_bounds = array<i64: 128, 32>}]} {
    %c0 = arith.constant 0 : index
    %c0_0 = arith.constant 0 : index
    %0 = vector.load %arg1[%c0, %c0_0] : memref<128x16xf32, #tpu.memory_space<vmem>>, vector<128x16xf32>
    %c0_1 = arith.constant 0 : index
    %c0_2 = arith.constant 0 : index
    %1 = vector.load %arg8[%c0_1, %c0_2] : memref<160x16xf32, #tpu.memory_space<vmem>>, vector<128x16xf32>
    tpu.vector_store %arg8[%c0_1, %c0_2], %0 {strides = array<i32>} : memref<160x16xf32, #tpu.memory_space<vmem>>, vector<128x16xf32>,
    %c0_3 = arith.constant 0 : index
    %c0_4 = arith.constant 0 : index
    %2 = vector.load %arg2[%c0_3, %c0_4] : memref<32x16xf32, #tpu.memory_space<vmem>>, vector<32x16xf32>
    %c128 = arith.constant 128 : index
    %c0_5 = arith.constant 0 : index
    %3 = vector.load %arg8[%c128, %c0_5] : memref<160x16xf32, #tpu.memory_space<vmem>>, vector<32x16xf32>
    tpu.vector_store %arg8[%c128, %c0_5], %2 {strides = array<i32>} : memref<160x16xf32, #tpu.memory_space<vmem>>, vector<32x16xf32>,
    %c0_6 = arith.constant 0 : index
    %c0_7 = arith.constant 0 : index
    %4 = vector.load %arg8[%c0_6, %c0_7] : memref<160x16xf32, #tpu.memory_space<vmem>>, vector<128x16xf32>
    %c0_8 = arith.constant 0 : index
    %c0_9 = arith.constant 0 : index
    %c0_10 = arith.constant 0 : index
    %5 = vector.load %arg3[%c0_8, %c0_9, %c0_10] : memref<4x16x16xf32, #tpu.memory_space<vmem>>, vector<1x16x16xf32>
    %6 = vector.shape_cast %5 : vector<1x16x16xf32> to vector<16x16xf32>
    %cst = arith.constant dense<0.000000e+00> : vector<128x16xf32>
    %7 = tpu.matmul %4, %6, %cst {dimension_numbers = #tpu.dot_dimension_numbers<[1], [0], [0], [1], [0, 0, 1, 1], [], []>} : vector<128x16xf32>, vector<16x16xf32>, vector<128x16xf32> -> vector<128x16xf32>
    %c1 = arith.constant 1 : index
    %c0_11 = arith.constant 0 : index
    %8 = vector.load %arg8[%c1, %c0_11] : memref<160x16xf32, #tpu.memory_space<vmem>>, vector<128x16xf32>
    %c1_12 = arith.constant 1 : index
    %c0_13 = arith.constant 0 : index
    %c0_14 = arith.constant 0 : index
    %9 = vector.load %arg3[%c1_12, %c0_13, %c0_14] : memref<4x16x16xf32, #tpu.memory_space<vmem>>, vector<1x16x16xf32>
    %10 = vector.shape_cast %9 : vector<1x16x16xf32> to vector<16x16xf32>
    %cst_15 = arith.constant dense<0.000000e+00> : vector<128x16xf32>
    %11 = tpu.matmul %8, %10, %cst_15 {dimension_numbers = #tpu.dot_dimension_numbers<[1], [0], [0], [1], [0, 0, 1, 1], [], []>} : vector<128x16xf32>, vector<16x16xf32>, vector<128x16xf32> -> vector<128x16xf32>
    %12 = arith.addf %7, %11 : vector<128x16xf32>
    %c17 = arith.constant 17 : index
    %c0_16 = arith.constant 0 : index
    %13 = vector.load %arg8[%c17, %c0_16] : memref<160x16xf32, #tpu.memory_space<vmem>>, vector<128x16xf32>
    %c2 = arith.constant 2 : index
    %c0_17 = arith.constant 0 : index
    %c0_18 = arith.constant 0 : index
    %14 = vector.load %arg3[%c2, %c0_17, %c0_18] : memref<4x16x16xf32, #tpu.memory_space<vmem>>, vector<1x16x16xf32>
    %15 = vector.shape_cast %14 : vector<1x16x16xf32> to vector<16x16xf32>
    %cst_19 = arith.constant dense<0.000000e+00> : vector<128x16xf32>
    %16 = tpu.matmul %13, %15, %cst_19 {dimension_numbers = #tpu.dot_dimension_numbers<[1], [0], [0], [1], [0, 0, 1, 1], [], []>} : vector<128x16xf32>, vector<16x16xf32>, vector<128x16xf32> -> vector<128x16xf32>
    %17 = arith.addf %12, %16 : vector<128x16xf32>
    %c18 = arith.constant 18 : index
    %c0_20 = arith.constant 0 : index
    %18 = vector.load %arg8[%c18, %c0_20] : memref<160x16xf32, #tpu.memory_space<vmem>>, vector<128x16xf32>
    %c3 = arith.constant 3 : index
    %c0_21 = arith.constant 0 : index
    %c0_22 = arith.constant 0 : index
    %19 = vector.load %arg3[%c3, %c0_21, %c0_22] : memref<4x16x16xf32, #tpu.memory_space<vmem>>, vector<1x16x16xf32>
    %20 = vector.shape_cast %19 : vector<1x16x16xf32> to vector<16x16xf32>
    %cst_23 = arith.constant dense<0.000000e+00> : vector<128x16xf32>
    %21 = tpu.matmul %18, %20, %cst_23 {dimension_numbers = #tpu.dot_dimension_numbers<[1], [0], [0], [1], [0, 0, 1, 1], [], []>} : vector<128x16xf32>, vector<16x16xf32>, vector<128x16xf32> -> vector<128x16xf32>
    %22 = arith.addf %17, %21 : vector<128x16xf32>
    %c0_24 = arith.constant 0 : index
    %c0_25 = arith.constant 0 : index
    %23 = vector.load %arg4[%c0_24, %c0_25] : memref<1x16xf32, #tpu.memory_space<vmem>>, vector<1x16xf32>
    %24 = vector.broadcast %23 : vector<1x16xf32> to vector<128x16xf32>
    %25 = arith.addf %22, %24 : vector<128x16xf32>
    %cst_26 = arith.constant 0.000000e+00 : f32
    %26 = vector.broadcast %cst_26 : f32 to vector<128x16xf32>
    %27 = arith.maximumf %25, %26 : vector<128x16xf32>
    %c0_27 = arith.constant 0 : index
    %c0_28 = arith.constant 0 : index
    %28 = vector.load %arg5[%c0_27, %c0_28] : memref<16x32xf32, #tpu.memory_space<vmem>>, vector<16x32xf32>
    %cst_29 = arith.constant dense<0.000000e+00> : vector<128x32xf32>
    %29 = tpu.matmul %27, %28, %cst_29 {dimension_numbers = #tpu.dot_dimension_numbers<[1], [0], [0], [1], [0, 0, 1, 1], [], []>} : vector<128x16xf32>, vector<16x32xf32>, vector<128x32xf32> -> vector<128x32xf32>
    %c0_30 = arith.constant 0 : index
    %c0_31 = arith.constant 0 : index
    %30 = vector.load %arg6[%c0_30, %c0_31] : memref<1x32xf32, #tpu.memory_space<vmem>>, vector<1x32xf32>
    %31 = vector.broadcast %30 : vector<1x32xf32> to vector<128x32xf32>
    %32 = arith.addf %29, %31 : vector<128x32xf32>
    %c0_32 = arith.constant 0 : index
    %c0_33 = arith.constant 0 : index
    %33 = vector.load %arg7[%c0_32, %c0_33] : memref<128x32xf32, #tpu.memory_space<vmem>>, vector<128x32xf32>
    tpu.vector_store %arg7[%c0_32, %c0_33], %32 {strides = array<i32>} : memref<128x32xf32, #tpu.memory_space<vmem>>, vector<128x32xf32>,
    return
  }
  func.func @transform_0(%arg0: i32) -> (i32, i32) {
    %c0_i32 = arith.constant 0 : i32
    %c0_i32_0 = arith.constant 0 : i32
    return %arg0, %c0_i32 : i32, i32
  }
  func.func @transform_1(%arg0: i32) -> (i32, i32) {
    %c1_i32 = arith.constant 1 : i32
    %0 = arith.addi %arg0, %c1_i32 : i32
    %c4_i32 = arith.constant 4 : i32
    %1 = arith.muli %0, %c4_i32 : i32
    %c0_i32 = arith.constant 0 : i32
    %c0_i32_0 = arith.constant 0 : i32
    return %1, %c0_i32 : i32, i32
  }
  func.func @transform_2(%arg0: i32) -> (i32, i32, i32) {
    %c0_i32 = arith.constant 0 : i32
    %c0_i32_0 = arith.constant 0 : i32
    %c0_i32_1 = arith.constant 0 : i32
    %c0_i32_2 = arith.constant 0 : i32
    return %c0_i32, %c0_i32_0, %c0_i32_1 : i32, i32, i32
  }
  func.func @transform_3(%arg0: i32) -> (i32, i32) {
    %c0_i32 = arith.constant 0 : i32
    %c0_i32_0 = arith.constant 0 : i32
    %c0_i32_1 = arith.constant 0 : i32
    return %c0_i32, %c0_i32_0 : i32, i32
  }
  func.func @transform_4(%arg0: i32) -> (i32, i32) {
    %c0_i32 = arith.constant 0 : i32
    %c0_i32_0 = arith.constant 0 : i32
    %c0_i32_1 = arith.constant 0 : i32
    return %c0_i32, %c0_i32_0 : i32, i32
  }
  func.func @transform_5(%arg0: i32) -> (i32, i32) {
    %c0_i32 = arith.constant 0 : i32
    %c0_i32_0 = arith.constant 0 : i32
    %c0_i32_1 = arith.constant 0 : i32
    return %c0_i32, %c0_i32_0 : i32, i32
  }
  func.func @transform_6(%arg0: i32) -> (i32, i32) {
    %c0_i32 = arith.constant 0 : i32
    %c0_i32_0 = arith.constant 0 : i32
    return %arg0, %c0_i32 : i32, i32
  }
}

</mosaic_0001>

<llo_original>
// kernel: tpu_custom_call.1
$region0: #{tpu_custom_call.1}
  #allocation0 [shape = 'u32[]', space=smem, size = 0x4, offset = 0x4, fixed_abs, tag = 'smem constant byte address 0x4 - core index']
  #allocation1 [shape = 'u32[72,128]{1,0:T(1,128)}', space=vmem, size = 0x9000, scoped, tag = 'internal scratch']
  #allocation2 [shape = 'f32[160,16]{1,0:T(8,128)}', space=vmem, size = 0x14000, scoped, tag = 'scratch operand']
  %s0 = inlined_call_operand.vmem [shape: f32[800,16], index: 0, kind: input, shape index: {}]
  %s1 = inlined_call_operand.vmem [shape: f32[800,16], index: 1, kind: input, shape index: {}]
  %s2 = inlined_call_operand.vmem [shape: f32[4,16,16], index: 2, kind: input, shape index: {}]
  %s3 = inlined_call_operand.vmem [shape: f32[1,16], index: 3, kind: input, shape index: {}]
  %s4 = inlined_call_operand.vmem [shape: f32[16,32], index: 4, kind: input, shape index: {}]
  %s5 = inlined_call_operand.vmem [shape: f32[1,32], index: 5, kind: input, shape index: {}]
  %s6 = inlined_call_operand.vmem [shape: f32[768,32], index: 6, kind: output, shape index: {}]
  %s7 = sld [smem:[#allocation0]]
  $region57: #{tpu_custom_call.1} parent=0
    _
  %s9 = ssub.s32 1, %s7
  %s10 = scalar_select 0, %s9, %s7
  loop: start=0, step=1, limit=8
  $region2: #{tpu_custom_call.1} parent=0 // loop_pre_header
    _
  $region3: #{tpu_custom_call.1} parent=0 // loop_header
    %s12 = sphi 0, %s16
    %p13 = scmp.ge.s32.totalorder %s12, 8
    %s22 = sphi 0, %s24
    %s25 = sphi 0, %s22
    %s26 = sphi 0, %s25
    %s42 = sphi 0, %s26
    %s52 = sphi 0, %s54
    %s55 = sphi 0, %s52
    %s56 = sphi 0, %s55
    %s72 = sphi 0, %s56
    %s76 = sphi 0, %s76
    %s78 = sphi 0, %s76
    %s79 = sphi 0, %s78
    %s93 = sphi 0, %s79
    %s97 = sphi 0, %s97
    %s99 = sphi 0, %s97
    %s100 = sphi 0, %s99
    %s114 = sphi 0, %s100
    %s118 = sphi 0, %s118
    %s120 = sphi 0, %s118
    %s121 = sphi 0, %s120
    %s135 = sphi 0, %s121
    %s139 = sphi 0, %s139
    %s141 = sphi 0, %s139
    %s142 = sphi 0, %s141
    %s156 = sphi 0, %s142
    %s162 = sphi 0, %s164
    %s165 = sphi 0, %s162
    %s166 = sphi 0, %s165
    %s182 = sphi 0, %s166
  $region4: #{tpu_custom_call.1} parent=0 // loop_header_branch
    %15 = sbr.rel (%p13) target = $region8
  $region5: #{tpu_custom_call.1} parent=0 // loop_body
    %s17 = ssub.s32 %s12, 1
    %s18 = ssub.s32 %s12, 2
    %s19 = sadd.s32 %s12, 1
    %s20 = ssub.s32 %s12, %s19
    %p21 = scmp.eq.s32.totalorder %s20, 0
    %s23 = sadd.s32 %s22, 1
    %s24 = scalar_select %p21, %s22, %s23
    %p27 = pneg %p21
    %p28 = scmp.eq.s32.totalorder %s12, 5
    %p29 = por %p27, %p28
    %p30 = scmp.ne.s32.totalorder %s22, %s25
    %p31 = scmp.eq.s32.totalorder %s12, 0
    %p32 = por %p30, %p31
    %p33 = scmp.ne.s32.totalorder %s22, %s25
    %p34 = scmp.eq.s32.totalorder %s17, 5
    %p35 = por %p33, %p34
    %p36 = scmp.ne.s32.totalorder %s25, %s26
    %p37 = scmp.eq.s32.totalorder %s17, 0
    %p38 = por %p36, %p37
    %p39 = scmp.ne.s32.totalorder %s25, %s26
    %p40 = scmp.eq.s32.totalorder %s18, 5
    %p41 = por %p39, %p40
    %p43 = scmp.ne.s32.totalorder %s26, %s42
    %p44 = scmp.eq.s32.totalorder %s18, 0
    %p45 = por %p43, %p44
    %s46 = sadd.s32 %s12, 1
    %s47 = smul.u32 %s46, 4
    %s48 = sadd.s32 %s19, 1
    %s49 = smul.u32 %s48, 4
    %s50 = ssub.s32 %s47, %s49
    %p51 = scmp.eq.s32.totalorder %s50, 0
    %s53 = sadd.s32 %s52, 1
    %s54 = scalar_select %p51, %s52, %s53
    %p57 = pneg %p51
    %p58 = scmp.eq.s32.totalorder %s12, 5
    %p59 = por %p57, %p58
    %p60 = scmp.ne.s32.totalorder %s52, %s55
    %p61 = scmp.eq.s32.totalorder %s12, 0
    %p62 = por %p60, %p61
    %p63 = scmp.ne.s32.totalorder %s52, %s55
    %p64 = scmp.eq.s32.totalorder %s17, 5
    %p65 = por %p63, %p64
    %p66 = scmp.ne.s32.totalorder %s55, %s56
    %p67 = scmp.eq.s32.totalorder %s17, 0
    %p68 = por %p66, %p67
    %p69 = scmp.ne.s32.totalorder %s55, %s56
    %p70 = scmp.eq.s32.totalorder %s18, 5
    %p71 = por %p69, %p70
    %p73 = scmp.ne.s32.totalorder %s56, %s72
    %p74 = scmp.eq.s32.totalorder %s18, 0
    %p75 = por %p73, %p74
    %s77 = sadd.s32 %s76, 1
    %p80 = scmp.eq.s32.totalorder %s12, 5
    %p81 = scmp.ne.s32.totalorder %s76, %s78
    %p82 = scmp.eq.s32.totalorder %s12, 0
    %p83 = por %p81, %p82
    %p84 = scmp.ne.s32.totalorder %s76, %s78
    %p85 = scmp.eq.s32.totalorder %s17, 5
    %p86 = por %p84, %p85
    %p87 = scmp.ne.s32.totalorder %s78, %s79
    %p88 = scmp.eq.s32.totalorder %s17, 0
    %p89 = por %p87, %p88
    %p90 = scmp.ne.s32.totalorder %s78, %s79
    %p91 = scmp.eq.s32.totalorder %s18, 5
    %p92 = por %p90, %p91
    %p94 = scmp.ne.s32.totalorder %s79, %s93
    %p95 = scmp.eq.s32.totalorder %s18, 0
    %p96 = por %p94, %p95
    %s98 = sadd.s32 %s97, 1
    %p101 = scmp.eq.s32.totalorder %s12, 5
    %p102 = scmp.ne.s32.totalorder %s97, %s99
    %p103 = scmp.eq.s32.totalorder %s12, 0
    %p104 = por %p102, %p103
    %p105 = scmp.ne.s32.totalorder %s97, %s99
    %p106 = scmp.eq.s32.totalorder %s17, 5
    %p107 = por %p105, %p106
    %p108 = scmp.ne.s32.totalorder %s99, %s100
    %p109 = scmp.eq.s32.totalorder %s17, 0
    %p110 = por %p108, %p109
    %p111 = scmp.ne.s32.totalorder %s99, %s100
    %p112 = scmp.eq.s32.totalorder %s18, 5
    %p113 = por %p111, %p112
    %p115 = scmp.ne.s32.totalorder %s100, %s114
    %p116 = scmp.eq.s32.totalorder %s18, 0
    %p117 = por %p115, %p116
    %s119 = sadd.s32 %s118, 1
    %p122 = scmp.eq.s32.totalorder %s12, 5
    %p123 = scmp.ne.s32.totalorder %s118, %s120
    %p124 = scmp.eq.s32.totalorder %s12, 0
    %p125 = por %p123, %p124
    %p126 = scmp.ne.s32.totalorder %s118, %s120
    %p127 = scmp.eq.s32.totalorder %s17, 5
    %p128 = por %p126, %p127
    %p129 = scmp.ne.s32.totalorder %s120, %s121
    %p130 = scmp.eq.s32.totalorder %s17, 0
    %p131 = por %p129, %p130
    %p132 = scmp.ne.s32.totalorder %s120, %s121
    %p133 = scmp.eq.s32.totalorder %s18, 5
    %p134 = por %p132, %p133
    %p136 = scmp.ne.s32.totalorder %s121, %s135
    %p137 = scmp.eq.s32.totalorder %s18, 0
    %p138 = por %p136, %p137
    %s140 = sadd.s32 %s139, 1
    %p143 = scmp.eq.s32.totalorder %s12, 5
    %p144 = scmp.ne.s32.totalorder %s139, %s141
    %p145 = scmp.eq.s32.totalorder %s12, 0
    %p146 = por %p144, %p145
    %p147 = scmp.ne.s32.totalorder %s139, %s141
    %p148 = scmp.eq.s32.totalorder %s17, 5
    %p149 = por %p147, %p148
    %p150 = scmp.ne.s32.totalorder %s141, %s142
    %p151 = scmp.eq.s32.totalorder %s17, 0
    %p152 = por %p150, %p151
    %p153 = scmp.ne.s32.totalorder %s141, %s142
    %p154 = scmp.eq.s32.totalorder %s18, 5
    %p155 = por %p153, %p154
    %p157 = scmp.ne.s32.totalorder %s142, %s156
    %p158 = scmp.eq.s32.totalorder %s18, 0
    %p159 = por %p157, %p158
    %s160 = ssub.s32 %s12, %s19
    %p161 = scmp.eq.s32.totalorder %s160, 0
    %s163 = sadd.s32 %s162, 1
    %s164 = scalar_select %p161, %s162, %s163
    %p167 = pneg %p161
    %p168 = scmp.eq.s32.totalorder %s12, 5
    %p169 = por %p167, %p168
    %p170 = scmp.ne.s32.totalorder %s162, %s165
    %p171 = scmp.eq.s32.totalorder %s12, 0
    %p172 = por %p170, %p171
    %p173 = scmp.ne.s32.totalorder %s162, %s165
    %p174 = scmp.eq.s32.totalorder %s17, 5
    %p175 = por %p173, %p174
    %p176 = scmp.ne.s32.totalorder %s165, %s166
    %p177 = scmp.eq.s32.totalorder %s17, 0
    %p178 = por %p176, %p177
    %p179 = scmp.ne.s32.totalorder %s165, %s166
    %p180 = scmp.eq.s32.totalorder %s18, 5
    %p181 = por %p179, %p180
    %p183 = scmp.ne.s32.totalorder %s166, %s182
    %p184 = scmp.eq.s32.totalorder %s18, 0
    %p185 = por %p183, %p184
    %p186 = scmp.le.s32.totalorder 1, %s12
    %p187 = scmp.lt.s32.totalorder %s12, 7
    %p188 = pnand %p186, %p187
    %p189 = pneg %p188
    // Predicated region
    $region9: #{tpu_custom_call.1} parent=5 // pred_check
      _
    $region10: #{tpu_custom_call.1} parent=5 // pred_check_branch
      %191 = sbr.rel (%p188) target = $region12
    $region11: #{tpu_custom_call.1} parent=5 // pred_region
      %s192 = ssub.s32 %s12, 1
      // Predicated region
      $region13: #{tpu_custom_call.1} parent=11 // pred_check
        %p193 = pneg %p89
      $region14: #{tpu_custom_call.1} parent=11 // pred_check_branch
        %195 = sbr.rel (%p193) target = $region16
      $region15: #{tpu_custom_call.1} parent=11 // pred_region
        _
      $region16: #{tpu_custom_call.1} parent=11 // pred_fallthru
        _
      // Predicated region
      $region17: #{tpu_custom_call.1} parent=11 // pred_check
        %p196 = pneg %p110
      $region18: #{tpu_custom_call.1} parent=11 // pred_check_branch
        %198 = sbr.rel (%p196) target = $region20
      $region19: #{tpu_custom_call.1} parent=11 // pred_region
        _
      $region20: #{tpu_custom_call.1} parent=11 // pred_fallthru
        _
      // Predicated region
      $region21: #{tpu_custom_call.1} parent=11 // pred_check
        %p199 = pneg %p131
      $region22: #{tpu_custom_call.1} parent=11 // pred_check_branch
        %201 = sbr.rel (%p199) target = $region24
      $region23: #{tpu_custom_call.1} parent=11 // pred_region
        _
      $region24: #{tpu_custom_call.1} parent=11 // pred_fallthru
        _
      // Predicated region
      $region25: #{tpu_custom_call.1} parent=11 // pred_check
        %p202 = pneg %p152
      $region26: #{tpu_custom_call.1} parent=11 // pred_check_branch
        %204 = sbr.rel (%p202) target = $region28
      $region27: #{tpu_custom_call.1} parent=11 // pred_region
        _
      $region28: #{tpu_custom_call.1} parent=11 // pred_fallthru
        _
    $region12: #{tpu_custom_call.1} parent=5 // pred_fallthru
      _
    %p205 = scmp.lt.s32.totalorder %s12, 6
    // Predicated region
    $region29: #{tpu_custom_call.1} parent=5 // pred_check
      %p206 = pneg %p205
    $region30: #{tpu_custom_call.1} parent=5 // pred_check_branch
      %208 = sbr.rel (%p206) target = $region32
    $region31: #{tpu_custom_call.1} parent=5 // pred_region
      // Predicated region
      $region33: #{tpu_custom_call.1} parent=31 // pred_check
        %p209 = pneg %p32
      $region34: #{tpu_custom_call.1} parent=31 // pred_check_branch
        %211 = sbr.rel (%p209) target = $region36
      $region35: #{tpu_custom_call.1} parent=31 // pred_region
        %s212 = smul.u32 16, %s12
        %s213 = ssub.s32 100, %s212
        %p214 = scmp.lt.s32.totalorder %s213, 16
        %s215 = scalar_select %p214, %s213, 16
        %s216 = smul.u32 8, %s215
        %p217 = scmp.lt.s32.totalorder %s212, 99
        %s218 = scalar_select %p217, %s212, 99
        %s219 = smul.addr %s218, 8
        %s220 = scalar_lea.vmem %s0, %s219
        %s221 = smul.u32 16, %s12
        %s222 = ssub.s32 100, %s221
        %p223 = scmp.lt.s32.totalorder %s222, 16
        %s224 = scalar_select %p223, %s222, 16
        %s225 = smul.u32 8, %s224
      $region36: #{tpu_custom_call.1} parent=31 // pred_fallthru
        _
      // Predicated region
      $region37: #{tpu_custom_call.1} parent=31 // pred_check
        %p226 = pneg %p62
      $region38: #{tpu_custom_call.1} parent=31 // pred_check_branch
        %228 = sbr.rel (%p226) target = $region40
      $region39: #{tpu_custom_call.1} parent=31 // pred_region
        %s229 = sadd.s32 %s12, 1
        %s230 = smul.u32 %s229, 4
        %s231 = smul.u32 4, %s230
        %p232 = scmp.lt.s32.totalorder %s231, 99
        %s233 = scalar_select %p232, %s231, 99
        %s234 = smul.addr %s233, 8
        %s235 = scalar_lea.vmem %s1, %s234
        %s236 = sadd.s32 %s12, 1
        %s237 = smul.u32 %s236, 4
        %s238 = smul.u32 4, %s237
      $region40: #{tpu_custom_call.1} parent=31 // pred_fallthru
        _
    $region32: #{tpu_custom_call.1} parent=5 // pred_fallthru
      _
    %p239 = scmp.le.s32.totalorder 1, %s12
    %p240 = scmp.lt.s32.totalorder %s12, 7
    %p241 = pnand %p239, %p240
    %p242 = pneg %p241
    // Predicated region
    $region41: #{tpu_custom_call.1} parent=5 // pred_check
      _
    $region42: #{tpu_custom_call.1} parent=5 // pred_check_branch
      %244 = sbr.rel (%p241) target = $region44
    $region43: #{tpu_custom_call.1} parent=5 // pred_region
      %s245 = ssub.s32 %s12, 1
      %s246 = smul.u32 16, %s17
      %s247 = ssub.s32 100, %s246
      %p248 = scmp.lt.s32.totalorder %s247, 16
      %s249 = scalar_select %p248, %s247, 16
      %s250 = smul.u32 8, %s249
      %p251 = scmp.lt.s32.totalorder %s246, 99
      %s252 = scalar_select %p251, %s246, 99
      %s253 = smul.addr %s252, 8
      %s254 = scalar_lea.vmem %s0, %s253
      %p255 = pneg %p38
      %p256 = pneg %p35
      %s257 = sadd.s32 %s17, 1
      %s258 = smul.u32 %s257, 4
      %s259 = smul.u32 4, %s258
      %p260 = scmp.lt.s32.totalorder %s259, 99
      %s261 = scalar_select %p260, %s259, 99
      %s262 = smul.addr %s261, 8
      %s263 = scalar_lea.vmem %s1, %s262
      %p264 = pneg %p68
      %p265 = pneg %p65
      %p266 = pneg %p89
      %p267 = pneg %p86
      %p268 = pneg %p110
      %p269 = pneg %p107
      %p270 = pneg %p131
      %p271 = pneg %p128
      %p272 = pneg %p152
      %p273 = pneg %p149
      %p274 = pneg %p178
      %p275 = pneg %p175
      %s276 = smul.u32 16, %s17
      %p277 = scmp.lt.s32.totalorder %s276, 95
      %s278 = scalar_select %p277, %s276, 95
      %s279 = smul.addr %s278, 8
      %s280 = scalar_lea.vmem %s6, %s279
      %s281 = smul.u32 16, %s17
      %s282 = ssub.s32 100, %s281
      %p283 = scmp.lt.s32.totalorder %s282, 16
      %s284 = scalar_select %p283, %s282, 16
      %s285 = smul.u32 8, %s284
      %p286 = scmp.lt.s32.totalorder %s281, 99
      %s287 = scalar_select %p286, %s281, 99
      %s288 = smul.addr %s287, 8
      %s289 = scalar_lea.vmem %s0, %s288
      %s290 = smul.u32 16, %s17
      %s291 = ssub.s32 100, %s290
      %p292 = scmp.lt.s32.totalorder %s291, 16
      %s293 = scalar_select %p292, %s291, 16
      %s294 = smul.u32 8, %s293
      %s295 = sadd.s32 %s17, 1
      %s296 = smul.u32 %s295, 4
      %s297 = smul.u32 4, %s296
      %p298 = scmp.lt.s32.totalorder %s297, 99
      %s299 = scalar_select %p298, %s297, 99
      %s300 = smul.addr %s299, 8
      %s301 = scalar_lea.vmem %s1, %s300
      %s302 = sadd.s32 %s17, 1
      %s303 = smul.u32 %s302, 4
      %s304 = smul.u32 4, %s303
      %s305 = smul.u32 16, %s17
      %p306 = scmp.lt.s32.totalorder %s305, 95
      %s307 = scalar_select %p306, %s305, 95
      %s308 = smul.addr %s307, 8
      %s309 = scalar_lea.vmem %s6, %s308
      %s310 = smul.u32 16, %s17
      %v311 = vld [vmem:[%s289] sm:$0xff]
      %v312 = vld [vmem:[%s289 + $0x8] sm:$0xff]
      %v313 = vld [vmem:[%s289 + $0x10] sm:$0xff]
      %v314 = vld [vmem:[%s289 + $0x18] sm:$0xff]
      %v315 = vld [vmem:[%s289 + $0x20] sm:$0xff]
      %v316 = vld [vmem:[%s289 + $0x28] sm:$0xff]
      %v317 = vld [vmem:[%s289 + $0x30] sm:$0xff]
      %v318 = vld [vmem:[%s289 + $0x38] sm:$0xff]
      %v319 = vld [vmem:[%s289 + $0x40] sm:$0xff]
      %v320 = vld [vmem:[%s289 + $0x48] sm:$0xff]
      %v321 = vld [vmem:[%s289 + $0x50] sm:$0xff]
      %v322 = vld [vmem:[%s289 + $0x58] sm:$0xff]
      %v323 = vld [vmem:[%s289 + $0x60] sm:$0xff]
      %v324 = vld [vmem:[%s289 + $0x68] sm:$0xff]
      %v325 = vld [vmem:[%s289 + $0x70] sm:$0xff]
      %v326 = vld [vmem:[%s289 + $0x78] sm:$0xff]
      %vm327 = vcmask 130048
      %328 = vst.msk [vmem:[#allocation2] sm:$0xff] %vm327, %v311
      %329 = vst.msk [vmem:[#allocation2 + $0x8] sm:$0xff] %vm327, %v312
      %330 = vst.msk [vmem:[#allocation2 + $0x10] sm:$0xff] %vm327, %v313
      %331 = vst.msk [vmem:[#allocation2 + $0x18] sm:$0xff] %vm327, %v314
      %332 = vst.msk [vmem:[#allocation2 + $0x20] sm:$0xff] %vm327, %v315
      %333 = vst.msk [vmem:[#allocation2 + $0x28] sm:$0xff] %vm327, %v316
      %334 = vst.msk [vmem:[#allocation2 + $0x30] sm:$0xff] %vm327, %v317
      %335 = vst.msk [vmem:[#allocation2 + $0x38] sm:$0xff] %vm327, %v318
      %336 = vst.msk [vmem:[#allocation2 + $0x40] sm:$0xff] %vm327, %v319
      %337 = vst.msk [vmem:[#allocation2 + $0x48] sm:$0xff] %vm327, %v320
      %338 = vst.msk [vmem:[#allocation2 + $0x50] sm:$0xff] %vm327, %v321
      %339 = vst.msk [vmem:[#allocation2 + $0x58] sm:$0xff] %vm327, %v322
      %340 = vst.msk [vmem:[#allocation2 + $0x60] sm:$0xff] %vm327, %v323
      %341 = vst.msk [vmem:[#allocation2 + $0x68] sm:$0xff] %vm327, %v324
      %342 = vst.msk [vmem:[#allocation2 + $0x70] sm:$0xff] %vm327, %v325
      %343 = vst.msk [vmem:[#allocation2 + $0x78] sm:$0xff] %vm327, %v326
      %v344 = vld [vmem:[%s301] sm:$0xff]
      %v345 = vld [vmem:[%s301 + $0x8] sm:$0xff]
      %v346 = vld [vmem:[%s301 + $0x10] sm:$0xff]
      %v347 = vld [vmem:[%s301 + $0x18] sm:$0xff]
      %348 = vst.msk [vmem:[#allocation2 + $0x80] sm:$0xff] %vm327, %v344
      %349 = vst.msk [vmem:[#allocation2 + $0x88] sm:$0xff] %vm327, %v345
      %350 = vst.msk [vmem:[#allocation2 + $0x90] sm:$0xff] %vm327, %v346
      %351 = vst.msk [vmem:[#allocation2 + $0x98] sm:$0xff] %vm327, %v347
      %v352 = vld [vmem:[#allocation2] sm:$0xff]
      %v353 = vld [vmem:[#allocation2 + $0x8] sm:$0xff]
      %v354 = vld [vmem:[#allocation2 + $0x10] sm:$0xff]
      %v355 = vld [vmem:[#allocation2 + $0x18] sm:$0xff]
      %v356 = vld [vmem:[#allocation2 + $0x20] sm:$0xff]
      %v357 = vld [vmem:[#allocation2 + $0x28] sm:$0xff]
      %v358 = vld [vmem:[#allocation2 + $0x30] sm:$0xff]
      %v359 = vld [vmem:[#allocation2 + $0x38] sm:$0xff]
      %v360 = vld [vmem:[#allocation2 + $0x40] sm:$0xff]
      %v361 = vld [vmem:[#allocation2 + $0x48] sm:$0xff]
      %v362 = vld [vmem:[#allocation2 + $0x50] sm:$0xff]
      %v363 = vld [vmem:[#allocation2 + $0x58] sm:$0xff]
      %v364 = vld [vmem:[#allocation2 + $0x60] sm:$0xff]
      %v365 = vld [vmem:[#allocation2 + $0x68] sm:$0xff]
      %v366 = vld [vmem:[#allocation2 + $0x70] sm:$0xff]
      %v367 = vld [vmem:[#allocation2 + $0x78] sm:$0xff]
      %v368 = vld [vmem:[%s2] sm:$0xff]
      %v369 = vld [vmem:[%s2 + $0x8] sm:$0xff]
      %v370 = vld [vmem:[#allocation2 + $0x1] sm:$0xff]
      %v371 = vld [vmem:[#allocation2 + $0x9] sm:$0xff]
      %v372 = vld [vmem:[#allocation2 + $0x11] sm:$0xff]
      %v373 = vld [vmem:[#allocation2 + $0x19] sm:$0xff]
      %v374 = vld [vmem:[#allocation2 + $0x21] sm:$0xff]
      %v375 = vld [vmem:[#allocation2 + $0x29] sm:$0xff]
      %v376 = vld [vmem:[#allocation2 + $0x31] sm:$0xff]
      %v377 = vld [vmem:[#allocation2 + $0x39] sm:$0xff]
      %v378 = vld [vmem:[#allocation2 + $0x41] sm:$0xff]
      %v379 = vld [vmem:[#allocation2 + $0x49] sm:$0xff]
      %v380 = vld [vmem:[#allocation2 + $0x51] sm:$0xff]
      %v381 = vld [vmem:[#allocation2 + $0x59] sm:$0xff]
      %v382 = vld [vmem:[#allocation2 + $0x61] sm:$0xff]
      %v383 = vld [vmem:[#allocation2 + $0x69] sm:$0xff]
      %v384 = vld [vmem:[#allocation2 + $0x71] sm:$0xff]
      %v385 = vld [vmem:[#allocation2 + $0x79] sm:$0xff]
      %s386 = scalar_lea.vmem %s2, 16
      %v387 = vld [vmem:[%s386] sm:$0xff]
      %v388 = vld [vmem:[%s386 + $0x8] sm:$0xff]
      %v390 = vsel %vm327, %v370, 0
      %v393 = vsel %vm327, %v371, 0
      %v396 = vsel %vm327, %v372, 0
      %v399 = vsel %vm327, %v373, 0
      %v402 = vsel %vm327, %v374, 0
      %v405 = vsel %vm327, %v375, 0
      %v408 = vsel %vm327, %v376, 0
      %v411 = vsel %vm327, %v377, 0
      %v414 = vsel %vm327, %v378, 0
      %v417 = vsel %vm327, %v379, 0
      %v420 = vsel %vm327, %v380, 0
      %v423 = vsel %vm327, %v381, 0
      %v426 = vsel %vm327, %v382, 0
      %v429 = vsel %vm327, %v383, 0
      %v432 = vsel %vm327, %v384, 0
      %v435 = vsel %vm327, %v385, 0
      %437 = vmatpush.msra.mxu0 0.0
      %438 = vmatpush.msra.mxu0 0.0
      %439 = vmatpush.msra.mxu0 0.0
      %440 = vmatpush.msra.mxu0 0.0
      %441 = vmatpush.msra.mxu0 0.0
      %442 = vmatpush.msra.mxu0 0.0
      %443 = vmatpush.msra.mxu0 0.0
      %444 = vmatpush.msra.mxu0 0.0
      %445 = vmatpush.msra.mxu0 0.0
      %446 = vmatpush.msra.mxu0 0.0
      %447 = vmatpush.msra.mxu0 0.0
      %448 = vmatpush.msra.mxu0 0.0
      %449 = vmatpush.msra.mxu0 0.0
      %450 = vmatpush.msra.mxu0 0.0
      %451 = vmatpush.msra.mxu0 %v388
      %452 = vmatpush.msra.mxu0 %v387
      %453 = vmatmul.f32.gmra.mxu0 %v390
      %v454 = vpop.f32.mrf.mxu0
      %v455 = vadd.f32 0.0, %v454
      %456 = vmatmul.f32.gmra.mxu0 %v393
      %v457 = vpop.f32.mrf.mxu0
      %v458 = vadd.f32 0.0, %v457
      %459 = vmatmul.f32.gmra.mxu0 %v396
      %v460 = vpop.f32.mrf.mxu0
      %v461 = vadd.f32 0.0, %v460
      %462 = vmatmul.f32.gmra.mxu0 %v399
      %v463 = vpop.f32.mrf.mxu0
      %v464 = vadd.f32 0.0, %v463
      %465 = vmatmul.f32.gmra.mxu0 %v402
      %v466 = vpop.f32.mrf.mxu0
      %v467 = vadd.f32 0.0, %v466
      %468 = vmatmul.f32.gmra.mxu0 %v405
      %v469 = vpop.f32.mrf.mxu0
      %v470 = vadd.f32 0.0, %v469
      %471 = vmatmul.f32.gmra.mxu0 %v408
      %v472 = vpop.f32.mrf.mxu0
      %v473 = vadd.f32 0.0, %v472
      %474 = vmatmul.f32.gmra.mxu0 %v411
      %v475 = vpop.f32.mrf.mxu0
      %v476 = vadd.f32 0.0, %v475
      %477 = vmatmul.f32.gmra.mxu0 %v414
      %v478 = vpop.f32.mrf.mxu0
      %v479 = vadd.f32 0.0, %v478
      %480 = vmatmul.f32.gmra.mxu0 %v417
      %v481 = vpop.f32.mrf.mxu0
      %v482 = vadd.f32 0.0, %v481
      %483 = vmatmul.f32.gmra.mxu0 %v420
      %v484 = vpop.f32.mrf.mxu0
      %v485 = vadd.f32 0.0, %v484
      %486 = vmatmul.f32.gmra.mxu0 %v423
      %v487 = vpop.f32.mrf.mxu0
      %v488 = vadd.f32 0.0, %v487
      %489 = vmatmul.f32.gmra.mxu0 %v426
      %v490 = vpop.f32.mrf.mxu0
      %v491 = vadd.f32 0.0, %v490
      %492 = vmatmul.f32.gmra.mxu0 %v429
      %v493 = vpop.f32.mrf.mxu0
      %v494 = vadd.f32 0.0, %v493
      %495 = vmatmul.f32.gmra.mxu0 %v432
      %v496 = vpop.f32.mrf.mxu0
      %v497 = vadd.f32 0.0, %v496
      %498 = vmatmul.f32.gmra.mxu0 %v435
      %v499 = vpop.f32.mrf.mxu0
      %v500 = vadd.f32 0.0, %v499
      %501 = vdwg.mxu0
      %v503 = vsel %vm327, %v352, 0
      %v506 = vsel %vm327, %v353, 0
      %v509 = vsel %vm327, %v354, 0
      %v512 = vsel %vm327, %v355, 0
      %v515 = vsel %vm327, %v356, 0
      %v518 = vsel %vm327, %v357, 0
      %v521 = vsel %vm327, %v358, 0
      %v524 = vsel %vm327, %v359, 0
      %v527 = vsel %vm327, %v360, 0
      %v530 = vsel %vm327, %v361, 0
      %v533 = vsel %vm327, %v362, 0
      %v536 = vsel %vm327, %v363, 0
      %v539 = vsel %vm327, %v364, 0
      %v542 = vsel %vm327, %v365, 0
      %v545 = vsel %vm327, %v366, 0
      %v548 = vsel %vm327, %v367, 0
      %550 = vmatpush.msra.mxu0 0.0
      %551 = vmatpush.msra.mxu0 0.0
      %552 = vmatpush.msra.mxu0 0.0
      %553 = vmatpush.msra.mxu0 0.0
      %554 = vmatpush.msra.mxu0 0.0
      %555 = vmatpush.msra.mxu0 0.0
      %556 = vmatpush.msra.mxu0 0.0
      %557 = vmatpush.msra.mxu0 0.0
      %558 = vmatpush.msra.mxu0 0.0
      %559 = vmatpush.msra.mxu0 0.0
      %560 = vmatpush.msra.mxu0 0.0
      %561 = vmatpush.msra.mxu0 0.0
      %562 = vmatpush.msra.mxu0 0.0
      %563 = vmatpush.msra.mxu0 0.0
      %564 = vmatpush.msra.mxu0 %v369
      %565 = vmatpush.msra.mxu0 %v368
      %566 = vmatmul.f32.gmra.mxu0 %v503
      %v567 = vpop.f32.mrf.mxu0
      %v568 = vadd.f32 %v455, %v567
      %569 = vmatmul.f32.gmra.mxu0 %v506
      %v570 = vpop.f32.mrf.mxu0
      %v571 = vadd.f32 %v458, %v570
      %572 = vmatmul.f32.gmra.mxu0 %v509
      %v573 = vpop.f32.mrf.mxu0
      %v574 = vadd.f32 %v461, %v573
      %575 = vmatmul.f32.gmra.mxu0 %v512
      %v576 = vpop.f32.mrf.mxu0
      %v577 = vadd.f32 %v464, %v576
      %578 = vmatmul.f32.gmra.mxu0 %v515
      %v579 = vpop.f32.mrf.mxu0
      %v580 = vadd.f32 %v467, %v579
      %581 = vmatmul.f32.gmra.mxu0 %v518
      %v582 = vpop.f32.mrf.mxu0
      %v583 = vadd.f32 %v470, %v582
      %584 = vmatmul.f32.gmra.mxu0 %v521
      %v585 = vpop.f32.mrf.mxu0
      %v586 = vadd.f32 %v473, %v585
      %587 = vmatmul.f32.gmra.mxu0 %v524
      %v588 = vpop.f32.mrf.mxu0
      %v589 = vadd.f32 %v476, %v588
      %590 = vmatmul.f32.gmra.mxu0 %v527
      %v591 = vpop.f32.mrf.mxu0
      %v592 = vadd.f32 %v479, %v591
      %593 = vmatmul.f32.gmra.mxu0 %v530
      %v594 = vpop.f32.mrf.mxu0
      %v595 = vadd.f32 %v482, %v594
      %596 = vmatmul.f32.gmra.mxu0 %v533
      %v597 = vpop.f32.mrf.mxu0
      %v598 = vadd.f32 %v485, %v597
      %599 = vmatmul.f32.gmra.mxu0 %v536
      %v600 = vpop.f32.mrf.mxu0
      %v601 = vadd.f32 %v488, %v600
      %602 = vmatmul.f32.gmra.mxu0 %v539
      %v603 = vpop.f32.mrf.mxu0
      %v604 = vadd.f32 %v491, %v603
      %605 = vmatmul.f32.gmra.mxu0 %v542
      %v606 = vpop.f32.mrf.mxu0
      %v607 = vadd.f32 %v494, %v606
      %608 = vmatmul.f32.gmra.mxu0 %v545
      %v609 = vpop.f32.mrf.mxu0
      %v610 = vadd.f32 %v497, %v609
      %611 = vmatmul.f32.gmra.mxu0 %v548
      %v612 = vpop.f32.mrf.mxu0
      %v613 = vadd.f32 %v500, %v612
      %614 = vdwg.mxu0
      %v615 = vld [vmem:[#allocation2 + $0x11] sm:$0xff]
      %v616 = vld [vmem:[#allocation2 + $0x19] sm:$0xff]
      %v617 = vld [vmem:[#allocation2 + $0x21] sm:$0xff]
      %v618 = vld [vmem:[#allocation2 + $0x29] sm:$0xff]
      %v619 = vld [vmem:[#allocation2 + $0x31] sm:$0xff]
      %v620 = vld [vmem:[#allocation2 + $0x39] sm:$0xff]
      %v621 = vld [vmem:[#allocation2 + $0x41] sm:$0xff]
      %v622 = vld [vmem:[#allocation2 + $0x49] sm:$0xff]
      %v623 = vld [vmem:[#allocation2 + $0x51] sm:$0xff]
      %v624 = vld [vmem:[#allocation2 + $0x59] sm:$0xff]
      %v625 = vld [vmem:[#allocation2 + $0x61] sm:$0xff]
      %v626 = vld [vmem:[#allocation2 + $0x69] sm:$0xff]
      %v627 = vld [vmem:[#allocation2 + $0x71] sm:$0xff]
      %v628 = vld [vmem:[#allocation2 + $0x79] sm:$0xff]
      %v629 = vld [vmem:[#allocation2 + $0x81] sm:$0xff]
      %v630 = vld [vmem:[#allocation2 + $0x89] sm:$0xff]
      %s631 = scalar_lea.vmem %s2, 32
      %v632 = vld [vmem:[%s631] sm:$0xff]
      %v633 = vld [vmem:[%s631 + $0x8] sm:$0xff]
      %v635 = vsel %vm327, %v615, 0
      %v638 = vsel %vm327, %v616, 0
      %v641 = vsel %vm327, %v617, 0
      %v644 = vsel %vm327, %v618, 0
      %v647 = vsel %vm327, %v619, 0
      %v650 = vsel %vm327, %v620, 0
      %v653 = vsel %vm327, %v621, 0
      %v656 = vsel %vm327, %v622, 0
      %v659 = vsel %vm327, %v623, 0
      %v662 = vsel %vm327, %v624, 0
      %v665 = vsel %vm327, %v625, 0
      %v668 = vsel %vm327, %v626, 0
      %v671 = vsel %vm327, %v627, 0
      %v674 = vsel %vm327, %v628, 0
      %v677 = vsel %vm327, %v629, 0
      %v680 = vsel %vm327, %v630, 0
      %682 = vmatpush.msra.mxu0 0.0
      %683 = vmatpush.msra.mxu0 0.0
      %684 = vmatpush.msra.mxu0 0.0
      %685 = vmatpush.msra.mxu0 0.0
      %686 = vmatpush.msra.mxu0 0.0
      %687 = vmatpush.msra.mxu0 0.0
      %688 = vmatpush.msra.mxu0 0.0
      %689 = vmatpush.msra.mxu0 0.0
      %690 = vmatpush.msra.mxu0 0.0
      %691 = vmatpush.msra.mxu0 0.0
      %692 = vmatpush.msra.mxu0 0.0
      %693 = vmatpush.msra.mxu0 0.0
      %694 = vmatpush.msra.mxu0 0.0
      %695 = vmatpush.msra.mxu0 0.0
      %696 = vmatpush.msra.mxu0 %v633
      %697 = vmatpush.msra.mxu0 %v632
      %698 = vmatmul.f32.gmra.mxu0 %v635
      %v699 = vpop.f32.mrf.mxu0
      %v700 = vadd.f32 0.0, %v699
      %701 = vmatmul.f32.gmra.mxu0 %v638
      %v702 = vpop.f32.mrf.mxu0
      %v703 = vadd.f32 0.0, %v702
      %704 = vmatmul.f32.gmra.mxu0 %v641
      %v705 = vpop.f32.mrf.mxu0
      %v706 = vadd.f32 0.0, %v705
      %707 = vmatmul.f32.gmra.mxu0 %v644
      %v708 = vpop.f32.mrf.mxu0
      %v709 = vadd.f32 0.0, %v708
      %710 = vmatmul.f32.gmra.mxu0 %v647
      %v711 = vpop.f32.mrf.mxu0
      %v712 = vadd.f32 0.0, %v711
      %713 = vmatmul.f32.gmra.mxu0 %v650
      %v714 = vpop.f32.mrf.mxu0
      %v715 = vadd.f32 0.0, %v714
      %716 = vmatmul.f32.gmra.mxu0 %v653
      %v717 = vpop.f32.mrf.mxu0
      %v718 = vadd.f32 0.0, %v717
      %719 = vmatmul.f32.gmra.mxu0 %v656
      %v720 = vpop.f32.mrf.mxu0
      %v721 = vadd.f32 0.0, %v720
      %722 = vmatmul.f32.gmra.mxu0 %v659
      %v723 = vpop.f32.mrf.mxu0
      %v724 = vadd.f32 0.0, %v723
      %725 = vmatmul.f32.gmra.mxu0 %v662
      %v726 = vpop.f32.mrf.mxu0
      %v727 = vadd.f32 0.0, %v726
      %728 = vmatmul.f32.gmra.mxu0 %v665
      %v729 = vpop.f32.mrf.mxu0
      %v730 = vadd.f32 0.0, %v729
      %731 = vmatmul.f32.gmra.mxu0 %v668
      %v732 = vpop.f32.mrf.mxu0
      %v733 = vadd.f32 0.0, %v732
      %734 = vmatmul.f32.gmra.mxu0 %v671
      %v735 = vpop.f32.mrf.mxu0
      %v736 = vadd.f32 0.0, %v735
      %737 = vmatmul.f32.gmra.mxu0 %v674
      %v738 = vpop.f32.mrf.mxu0
      %v739 = vadd.f32 0.0, %v738
      %740 = vmatmul.f32.gmra.mxu0 %v677
      %v741 = vpop.f32.mrf.mxu0
      %v742 = vadd.f32 0.0, %v741
      %743 = vmatmul.f32.gmra.mxu0 %v680
      %v744 = vpop.f32.mrf.mxu0
      %v745 = vadd.f32 0.0, %v744
      %746 = vdwg.mxu0
      %v747 = vadd.f32 %v568, %v700
      %v748 = vadd.f32 %v571, %v703
      %v749 = vadd.f32 %v574, %v706
      %v750 = vadd.f32 %v577, %v709
      %v751 = vadd.f32 %v580, %v712
      %v752 = vadd.f32 %v583, %v715
      %v753 = vadd.f32 %v586, %v718
      %v754 = vadd.f32 %v589, %v721
      %v755 = vadd.f32 %v592, %v724
      %v756 = vadd.f32 %v595, %v727
      %v757 = vadd.f32 %v598, %v730
      %v758 = vadd.f32 %v601, %v733
      %v759 = vadd.f32 %v604, %v736
      %v760 = vadd.f32 %v607, %v739
      %v761 = vadd.f32 %v610, %v742
      %v762 = vadd.f32 %v613, %v745
      %v763 = vld [vmem:[#allocation2 + $0x12] sm:$0xff]
      %v764 = vld [vmem:[#allocation2 + $0x1a] sm:$0xff]
      %v765 = vld [vmem:[#allocation2 + $0x22] sm:$0xff]
      %v766 = vld [vmem:[#allocation2 + $0x2a] sm:$0xff]
      %v767 = vld [vmem:[#allocation2 + $0x32] sm:$0xff]
      %v768 = vld [vmem:[#allocation2 + $0x3a] sm:$0xff]
      %v769 = vld [vmem:[#allocation2 + $0x42] sm:$0xff]
      %v770 = vld [vmem:[#allocation2 + $0x4a] sm:$0xff]
      %v771 = vld [vmem:[#allocation2 + $0x52] sm:$0xff]
      %v772 = vld [vmem:[#allocation2 + $0x5a] sm:$0xff]
      %v773 = vld [vmem:[#allocation2 + $0x62] sm:$0xff]
      %v774 = vld [vmem:[#allocation2 + $0x6a] sm:$0xff]
      %v775 = vld [vmem:[#allocation2 + $0x72] sm:$0xff]
      %v776 = vld [vmem:[#allocation2 + $0x7a] sm:$0xff]
      %v777 = vld [vmem:[#allocation2 + $0x82] sm:$0xff]
      %v778 = vld [vmem:[#allocation2 + $0x8a] sm:$0xff]
      %s779 = scalar_lea.vmem %s2, 48
      %v780 = vld [vmem:[%s779] sm:$0xff]
      %v781 = vld [vmem:[%s779 + $0x8] sm:$0xff]
      %v783 = vsel %vm327, %v763, 0
      %v786 = vsel %vm327, %v764, 0
      %v789 = vsel %vm327, %v765, 0
      %v792 = vsel %vm327, %v766, 0
      %v795 = vsel %vm327, %v767, 0
      %v798 = vsel %vm327, %v768, 0
      %v801 = vsel %vm327, %v769, 0
      %v804 = vsel %vm327, %v770, 0
      %v807 = vsel %vm327, %v771, 0
      %v810 = vsel %vm327, %v772, 0
      %v813 = vsel %vm327, %v773, 0
      %v816 = vsel %vm327, %v774, 0
      %v819 = vsel %vm327, %v775, 0
      %v822 = vsel %vm327, %v776, 0
      %v825 = vsel %vm327, %v777, 0
      %v828 = vsel %vm327, %v778, 0
      %830 = vmatpush.msra.mxu0 0.0
      %831 = vmatpush.msra.mxu0 0.0
      %832 = vmatpush.msra.mxu0 0.0
      %833 = vmatpush.msra.mxu0 0.0
      %834 = vmatpush.msra.mxu0 0.0
      %835 = vmatpush.msra.mxu0 0.0
      %836 = vmatpush.msra.mxu0 0.0
      %837 = vmatpush.msra.mxu0 0.0
      %838 = vmatpush.msra.mxu0 0.0
      %839 = vmatpush.msra.mxu0 0.0
      %840 = vmatpush.msra.mxu0 0.0
      %841 = vmatpush.msra.mxu0 0.0
      %842 = vmatpush.msra.mxu0 0.0
      %843 = vmatpush.msra.mxu0 0.0
      %844 = vmatpush.msra.mxu0 %v781
      %845 = vmatpush.msra.mxu0 %v780
      %846 = vmatmul.f32.gmra.mxu0 %v783
      %v847 = vpop.f32.mrf.mxu0
      %v848 = vadd.f32 0.0, %v847
      %849 = vmatmul.f32.gmra.mxu0 %v786
      %v850 = vpop.f32.mrf.mxu0
      %v851 = vadd.f32 0.0, %v850
      %852 = vmatmul.f32.gmra.mxu0 %v789
      %v853 = vpop.f32.mrf.mxu0
      %v854 = vadd.f32 0.0, %v853
      %855 = vmatmul.f32.gmra.mxu0 %v792
      %v856 = vpop.f32.mrf.mxu0
      %v857 = vadd.f32 0.0, %v856
      %858 = vmatmul.f32.gmra.mxu0 %v795
      %v859 = vpop.f32.mrf.mxu0
      %v860 = vadd.f32 0.0, %v859
      %861 = vmatmul.f32.gmra.mxu0 %v798
      %v862 = vpop.f32.mrf.mxu0
      %v863 = vadd.f32 0.0, %v862
      %864 = vmatmul.f32.gmra.mxu0 %v801
      %v865 = vpop.f32.mrf.mxu0
      %v866 = vadd.f32 0.0, %v865
      %867 = vmatmul.f32.gmra.mxu0 %v804
      %v868 = vpop.f32.mrf.mxu0
      %v869 = vadd.f32 0.0, %v868
      %870 = vmatmul.f32.gmra.mxu0 %v807
      %v871 = vpop.f32.mrf.mxu0
      %v872 = vadd.f32 0.0, %v871
      %873 = vmatmul.f32.gmra.mxu0 %v810
      %v874 = vpop.f32.mrf.mxu0
      %v875 = vadd.f32 0.0, %v874
      %876 = vmatmul.f32.gmra.mxu0 %v813
      %v877 = vpop.f32.mrf.mxu0
      %v878 = vadd.f32 0.0, %v877
      %879 = vmatmul.f32.gmra.mxu0 %v816
      %v880 = vpop.f32.mrf.mxu0
      %v881 = vadd.f32 0.0, %v880
      %882 = vmatmul.f32.gmra.mxu0 %v819
      %v883 = vpop.f32.mrf.mxu0
      %v884 = vadd.f32 0.0, %v883
      %885 = vmatmul.f32.gmra.mxu0 %v822
      %v886 = vpop.f32.mrf.mxu0
      %v887 = vadd.f32 0.0, %v886
      %888 = vmatmul.f32.gmra.mxu0 %v825
      %v889 = vpop.f32.mrf.mxu0
      %v890 = vadd.f32 0.0, %v889
      %891 = vmatmul.f32.gmra.mxu0 %v828
      %v892 = vpop.f32.mrf.mxu0
      %v893 = vadd.f32 0.0, %v892
      %894 = vdwg.mxu0
      %v895 = vadd.f32 %v747, %v848
      %v896 = vadd.f32 %v748, %v851
      %v897 = vadd.f32 %v749, %v854
      %v898 = vadd.f32 %v750, %v857
      %v899 = vadd.f32 %v751, %v860
      %v900 = vadd.f32 %v752, %v863
      %v901 = vadd.f32 %v753, %v866
      %v902 = vadd.f32 %v754, %v869
      %v903 = vadd.f32 %v755, %v872
      %v904 = vadd.f32 %v756, %v875
      %v905 = vadd.f32 %v757, %v878
      %v906 = vadd.f32 %v758, %v881
      %v907 = vadd.f32 %v759, %v884
      %v908 = vadd.f32 %v760, %v887
      %v909 = vadd.f32 %v761, %v890
      %v910 = vadd.f32 %v762, %v893
      %v911 = vld [vmem:[%s3] sm:$0x1]
      %v913 = vperm.slane %v911, 0
      %v915 = vadd.f32 %v895, %v913
      %v916 = vadd.f32 %v896, %v913
      %v917 = vadd.f32 %v897, %v913
      %v918 = vadd.f32 %v898, %v913
      %v919 = vadd.f32 %v899, %v913
      %v920 = vadd.f32 %v900, %v913
      %v921 = vadd.f32 %v901, %v913
      %v922 = vadd.f32 %v902, %v913
      %v923 = vadd.f32 %v903, %v913
      %v924 = vadd.f32 %v904, %v913
      %v925 = vadd.f32 %v905, %v913
      %v926 = vadd.f32 %v906, %v913
      %v927 = vadd.f32 %v907, %v913
      %v928 = vadd.f32 %v908, %v913
      %v929 = vadd.f32 %v909, %v913
      %v930 = vadd.f32 %v910, %v913
      %v931 = vmax.f32 %v915, 0.0
      %v932 = vmax.f32 %v916, 0.0
      %v933 = vmax.f32 %v917, 0.0
      %v934 = vmax.f32 %v918, 0.0
      %v935 = vmax.f32 %v919, 0.0
      %v936 = vmax.f32 %v920, 0.0
      %v937 = vmax.f32 %v921, 0.0
      %v938 = vmax.f32 %v922, 0.0
      %v939 = vmax.f32 %v923, 0.0
      %v940 = vmax.f32 %v924, 0.0
      %v941 = vmax.f32 %v925, 0.0
      %v942 = vmax.f32 %v926, 0.0
      %v943 = vmax.f32 %v927, 0.0
      %v944 = vmax.f32 %v928, 0.0
      %v945 = vmax.f32 %v929, 0.0
      %v946 = vmax.f32 %v930, 0.0
      %v947 = vld [vmem:[%s4] sm:$0xff]
      %v948 = vld [vmem:[%s4 + $0x8] sm:$0xff]
      %v949 = vld [vmem:[%s5] sm:$0x1]
      %v951 = vperm.slane %v949, 0
      %v954 = vsel %vm327, %v931, 0
      %v957 = vsel %vm327, %v932, 0
      %v960 = vsel %vm327, %v933, 0
      %v963 = vsel %vm327, %v934, 0
      %v966 = vsel %vm327, %v935, 0
      %v969 = vsel %vm327, %v936, 0
      %v972 = vsel %vm327, %v937, 0
      %v975 = vsel %vm327, %v938, 0
      %v978 = vsel %vm327, %v939, 0
      %v981 = vsel %vm327, %v940, 0
      %v984 = vsel %vm327, %v941, 0
      %v987 = vsel %vm327, %v942, 0
      %v990 = vsel %vm327, %v943, 0
      %v993 = vsel %vm327, %v944, 0
      %v996 = vsel %vm327, %v945, 0
      %v999 = vsel %vm327, %v946, 0
      %1001 = vmatpush.msra.mxu0 0.0
      %1002 = vmatpush.msra.mxu0 0.0
      %1003 = vmatpush.msra.mxu0 0.0
      %1004 = vmatpush.msra.mxu0 0.0
      %1005 = vmatpush.msra.mxu0 0.0
      %1006 = vmatpush.msra.mxu0 0.0
      %1007 = vmatpush.msra.mxu0 0.0
      %1008 = vmatpush.msra.mxu0 0.0
      %1009 = vmatpush.msra.mxu0 0.0
      %1010 = vmatpush.msra.mxu0 0.0
      %1011 = vmatpush.msra.mxu0 0.0
      %1012 = vmatpush.msra.mxu0 0.0
      %1013 = vmatpush.msra.mxu0 0.0
      %1014 = vmatpush.msra.mxu0 0.0
      %1015 = vmatpush.msra.mxu0 %v948
      %1016 = vmatpush.msra.mxu0 %v947
      %1017 = vmatmul.f32.gmra.mxu0 %v954
      %v1018 = vpop.f32.mrf.mxu0
      %v1019 = vadd.f32 %v951, %v1018
      %1020 = vmatmul.f32.gmra.mxu0 %v957
      %v1021 = vpop.f32.mrf.mxu0
      %v1022 = vadd.f32 %v951, %v1021
      %1023 = vmatmul.f32.gmra.mxu0 %v960
      %v1024 = vpop.f32.mrf.mxu0
      %v1025 = vadd.f32 %v951, %v1024
      %1026 = vmatmul.f32.gmra.mxu0 %v963
      %v1027 = vpop.f32.mrf.mxu0
      %v1028 = vadd.f32 %v951, %v1027
      %1029 = vmatmul.f32.gmra.mxu0 %v966
      %v1030 = vpop.f32.mrf.mxu0
      %v1031 = vadd.f32 %v951, %v1030
      %1032 = vmatmul.f32.gmra.mxu0 %v969
      %v1033 = vpop.f32.mrf.mxu0
      %v1034 = vadd.f32 %v951, %v1033
      %1035 = vmatmul.f32.gmra.mxu0 %v972
      %v1036 = vpop.f32.mrf.mxu0
      %v1037 = vadd.f32 %v951, %v1036
      %1038 = vmatmul.f32.gmra.mxu0 %v975
      %v1039 = vpop.f32.mrf.mxu0
      %v1040 = vadd.f32 %v951, %v1039
      %1041 = vmatmul.f32.gmra.mxu0 %v978
      %v1042 = vpop.f32.mrf.mxu0
      %v1043 = vadd.f32 %v951, %v1042
      %1044 = vmatmul.f32.gmra.mxu0 %v981
      %v1045 = vpop.f32.mrf.mxu0
      %v1046 = vadd.f32 %v951, %v1045
      %1047 = vmatmul.f32.gmra.mxu0 %v984
      %v1048 = vpop.f32.mrf.mxu0
      %v1049 = vadd.f32 %v951, %v1048
      %1050 = vmatmul.f32.gmra.mxu0 %v987
      %v1051 = vpop.f32.mrf.mxu0
      %v1052 = vadd.f32 %v951, %v1051
      %1053 = vmatmul.f32.gmra.mxu0 %v990
      %v1054 = vpop.f32.mrf.mxu0
      %v1055 = vadd.f32 %v951, %v1054
      %1056 = vmatmul.f32.gmra.mxu0 %v993
      %v1057 = vpop.f32.mrf.mxu0
      %v1058 = vadd.f32 %v951, %v1057
      %1059 = vmatmul.f32.gmra.mxu0 %v996
      %v1060 = vpop.f32.mrf.mxu0
      %v1061 = vadd.f32 %v951, %v1060
      %1062 = vmatmul.f32.gmra.mxu0 %v999
      %v1063 = vpop.f32.mrf.mxu0
      %v1064 = vadd.f32 %v951, %v1063
      %1065 = vdwg.mxu0
      %vm1066 = vcmask 261120
      %1067 = vst.msk [vmem:[%s309] sm:$0xff] %vm1066, %v1019
      %1068 = vst.msk [vmem:[%s309 + $0x8] sm:$0xff] %vm1066, %v1022
      %1069 = vst.msk [vmem:[%s309 + $0x10] sm:$0xff] %vm1066, %v1025
      %1070 = vst.msk [vmem:[%s309 + $0x18] sm:$0xff] %vm1066, %v1028
      %1071 = vst.msk [vmem:[%s309 + $0x20] sm:$0xff] %vm1066, %v1031
      %1072 = vst.msk [vmem:[%s309 + $0x28] sm:$0xff] %vm1066, %v1034
      %1073 = vst.msk [vmem:[%s309 + $0x30] sm:$0xff] %vm1066, %v1037
      %1074 = vst.msk [vmem:[%s309 + $0x38] sm:$0xff] %vm1066, %v1040
      %1075 = vst.msk [vmem:[%s309 + $0x40] sm:$0xff] %vm1066, %v1043
      %1076 = vst.msk [vmem:[%s309 + $0x48] sm:$0xff] %vm1066, %v1046
      %1077 = vst.msk [vmem:[%s309 + $0x50] sm:$0xff] %vm1066, %v1049
      %1078 = vst.msk [vmem:[%s309 + $0x58] sm:$0xff] %vm1066, %v1052
      %1079 = vst.msk [vmem:[%s309 + $0x60] sm:$0xff] %vm1066, %v1055
      %1080 = vst.msk [vmem:[%s309 + $0x68] sm:$0xff] %vm1066, %v1058
      %1081 = vst.msk [vmem:[%s309 + $0x70] sm:$0xff] %vm1066, %v1061
      %1082 = vst.msk [vmem:[%s309 + $0x78] sm:$0xff] %vm1066, %v1064
      %s1083 = smul.u32 16, %s17
      %p1084 = scmp.lt.s32.totalorder %s1083, 95
      %s1085 = scalar_select %p1084, %s1083, 95
      %s1086 = smul.addr %s1085, 8
      %s1087 = scalar_lea.vmem %s6, %s1086
      // Predicated region
      $region45: #{tpu_custom_call.1} parent=43 // pred_check
        %p1088 = pneg %p175
      $region46: #{tpu_custom_call.1} parent=43 // pred_check_branch
        %1090 = sbr.rel (%p1088) target = $region48
      $region47: #{tpu_custom_call.1} parent=43 // pred_region
        %s1091 = smul.u32 16, %s17
      $region48: #{tpu_custom_call.1} parent=43 // pred_fallthru
        _
    $region44: #{tpu_custom_call.1} parent=5 // pred_fallthru
      _
    %p1092 = scmp.le.s32.totalorder 2, %s12
    // Predicated region
    $region49: #{tpu_custom_call.1} parent=5 // pred_check
      %p1093 = pneg %p1092
    $region50: #{tpu_custom_call.1} parent=5 // pred_check_branch
      %1095 = sbr.rel (%p1093) target = $region52
    $region51: #{tpu_custom_call.1} parent=5 // pred_region
      %s1096 = ssub.s32 %s12, 2
      // Predicated region
      $region53: #{tpu_custom_call.1} parent=51 // pred_check
        %p1097 = pneg %p181
      $region54: #{tpu_custom_call.1} parent=51 // pred_check_branch
        %1099 = sbr.rel (%p1097) target = $region56
      $region55: #{tpu_custom_call.1} parent=51 // pred_region
        %s1100 = smul.u32 16, %s18
        %p1101 = scmp.lt.s32.totalorder %s1100, 95
        %s1102 = scalar_select %p1101, %s1100, 95
        %s1103 = smul.addr %s1102, 8
        %s1104 = scalar_lea.vmem %s6, %s1103
      $region56: #{tpu_custom_call.1} parent=51 // pred_fallthru
        _
    $region52: #{tpu_custom_call.1} parent=5 // pred_fallthru
      _
  $region6: #{tpu_custom_call.1} parent=0 // loop_footer
    %s16 = sadd.s32 1, %s12
  $region7: #{tpu_custom_call.1} parent=0 // loop_footer_branch
    %11 = sbr.rel target = $region3
  $region8: #{tpu_custom_call.1} parent=0 // loop_exit
    _

</llo_original>
